<compile_context>
chip_gen: v7x
topology: tpu7x:2x2x1
jax: 0.10.0
libtpu: 0.0.40
codegen_flags: <defaults>
</compile_context>

<pallas_src>
import functools

import numpy as np
import jax
import jax.numpy as jnp
from jax.experimental import pallas as pl
from jax.experimental.pallas import tpu as pltpu

F_PAD = 128  # every feature dim (1 / hidden / 1) zero-padded to 128 lanes; padding is exact.


# ---------------- fused Pallas kernel ----------------

def _graphsage_kernel(offs_ref, cuts_ref,                  # scalar prefetch (SMEM)
                      adj_hbm, x0_ref, wcat_ref, b_ref,    # inputs (adj_hbm: memory_space=ANY)
                      out_ref,                             # (b_pad, out_lanes) lane-dense output
                      adj_vmem, adj_sem, cat_ref, y_ref,   # scratch
                      *, batch_size, max_len, out_lanes, b_pad):
    l = pl.program_id(0)
    n_layers = pl.num_programs(0)

    # Layer 0: DMA the adjacency once into its single-buffered VMEM home and seed the state.
    @pl.when(l == 0)
    def _init():
        cp = pltpu.make_async_copy(adj_hbm, adj_vmem, adj_sem.at[0])
        cp.start()
        cat_ref[:, F_PAD:] = x0_ref[...]          # seed resident state with initial features
        cp.wait()

    # ---- one GraphConv layer (weights for layer l streamed via the grid axis) ----
    x_bf = cat_ref[:, F_PAD:]                                            # (N, F) bf16 state
    # neighbor aggregation agg[dst] = sum_src A[dst,src]*x[src]; bf16 operands, f32 accumulation
    agg = jnp.dot(adj_vmem[...], x_bf, preferred_element_type=jnp.float32)
    cat_ref[:, :F_PAD] = agg.astype(jnp.bfloat16)                        # cat = [agg | x_prev]
    # fused (A@x)@W_rel + x@W_root + b as a single K = 2*F_PAD bf16 matmul, f32 accumulate
    new_x = jnp.dot(cat_ref[...], wcat_ref[...],
                    preferred_element_type=jnp.float32) + b_ref[...]
    cat_ref[:, F_PAD:] = new_x.astype(jnp.bfloat16)
    # NOTE: reference calls `x.relu()` without assignment -> intentionally no ReLU.

    # ---- last layer: split / zero-pad / subtract-node-0 epilogue via dynamic-slice gather ----
    @pl.when(l == n_layers - 1)
    def _epilogue():
        y_ref[...] = new_x                                               # f32 node outputs
        pos = jax.lax.broadcasted_iota(jnp.int32, (max_len, 1), 0)
        # one-hot "spread" turns a (max_len, 1) column into a (1, out_lanes) lane-dense row
        spread = (jax.lax.broadcasted_iota(jnp.int32, (max_len, out_lanes), 0)
                  == jax.lax.broadcasted_iota(jnp.int32, (max_len, out_lanes), 1)
                  ).astype(jnp.float32)
        rows = []
        # TODO(synk): switch to lax.fori_loop for large batch sizes (vreg pressure / code size).
        for b in range(batch_size):
            off = offs_ref[b]
            cnt = cuts_ref[b]
            seg = y_ref[pl.ds(off, max_len), :][:, 0:1]                  # (max_len, 1) gather
            node0 = seg[0:1, 0:1]                                        # value at node 0 of graph b
            vals = jnp.where(pos < cnt, seg, 0.0) - node0                # zero-pad + subtract node0
            rows.append(jnp.sum(vals * spread, axis=0, keepdims=True))   # (1, out_lanes)
        if b_pad > batch_size:
            rows.append(jnp.zeros((b_pad - batch_size, out_lanes), jnp.float32))
        out_ref[...] = jnp.concatenate(rows, axis=0)                     # one full-tile store


# ---------------- wrapper ----------------

def _vmem_limit_bytes(resident_bytes):
    """Per-generation scoped-VMEM budget: generous for our residents, capped at ~3/4 physical."""
    try:
        phys = int(pltpu.get_tpu_info().vmem_capacity_bytes)   # 128 MiB v5e/v6e, 64 MiB v7x
    except Exception:
        phys = 64 * 1024 * 1024                                # conservative fallback (v7x per-TC)
    want = max(2 * int(resident_bytes), 16 * 1024 * 1024)
    return int(min(want, phys * 3 // 4))


def graphsage_forward(params, adj, flat_c, cut, max_len):
    """params: list of (W_rel, W_root, b_rel); W stored (in, out), zero-padded to (F_PAD, F_PAD)."""
    n_total = int(flat_c.shape[0])
    batch_size = len(cut)
    n_layers = len(params)

    # per-graph start offsets / lengths (exactly torch.split(x, cut))
    offs = np.concatenate([[0], np.cumsum(cut)[:-1]]).astype(np.int32)
    cuts = np.asarray(cut, np.int32)

    # node axis: pad so every per-graph gather window [off, off+max_len) stays in bounds and is
    # a sublane multiple.  Zero adjacency rows/cols and zero features keep the math exact.
    n_pad = max(int(adj.shape[0]), n_total, int(offs[-1]) + max_len)
    n_pad = -(-n_pad // 8) * 8
    adj_p = jnp.zeros((n_pad, n_pad), jnp.float32).at[:adj.shape[0], :adj.shape[1]].set(adj)

    # x = flat_c.view(-1, 1), zero-padded to (n_pad, F_PAD); bf16 (MXU-native operand)
    x0 = jnp.zeros((n_pad, F_PAD), jnp.float32).at[:n_total, 0].set(flat_c).astype(jnp.bfloat16)

    # per-layer fused weights: [agg | x] @ vstack([W_rel, W_root]) + b  (bf16 weights, f32 bias)
    w_cat = jnp.stack([jnp.concatenate([w_rel, w_root], axis=0)
                       for (w_rel, w_root, _) in params]).astype(jnp.bfloat16)  # (L, 2F, F)
    b_stk = jnp.stack([b_rel for (_, _, b_rel) in params]).astype(jnp.float32)  # (L, 1, F)

    b_pad = -(-batch_size // 8) * 8
    out_lanes = -(-max_len // 128) * 128          # lane-dense output: last dim multiple of 128

    kernel = functools.partial(_graphsage_kernel, batch_size=batch_size,
                               max_len=max_len, out_lanes=out_lanes, b_pad=b_pad)

    grid_spec = pltpu.PrefetchScalarGridSpec(
        num_scalar_prefetch=2,                    # offs, cuts -> SMEM
        grid=(n_layers,),                         # layer axis carries state -> sequential
        in_specs=[
            pl.BlockSpec(memory_space=pl.ANY),                                  # adjacency: DMA'd once
            pl.BlockSpec((n_pad, F_PAD), lambda l, o, c: (0, 0)),               # initial features
            pl.BlockSpec((None, 2 * F_PAD, F_PAD), lambda l, o, c: (l, 0, 0)),  # per-layer fused W (bf16)
            pl.BlockSpec((None, 1, F_PAD), lambda l, o, c: (l, 0, 0)),          # per-layer bias (f32)
        ],
        out_specs=pl.BlockSpec((b_pad, out_lanes), lambda l, o, c: (0, 0)),
        scratch_shapes=[
            pltpu.VMEM((n_pad, n_pad), jnp.bfloat16),       # adjacency, single-buffered resident
            pltpu.SemaphoreType.DMA((1,)),                  # its one-shot DMA semaphore
            pltpu.VMEM((n_pad, 2 * F_PAD), jnp.bfloat16),   # [agg | x] carried across layers
            pltpu.VMEM((n_pad, F_PAD), jnp.float32),        # f32 final-layer outputs for the gather
        ],
    )

    resident = (n_pad * n_pad * 2                      # adjacency scratch
                + n_pad * 2 * F_PAD * 2                # cat scratch
                + n_pad * F_PAD * 4                    # y scratch
                + 2 * n_pad * F_PAD * 2                # x0 (double-buffered input)
                + 2 * 2 * F_PAD * F_PAD * 2            # streamed weights (double-buffered)
                + 2 * 8 * F_PAD * 4                    # bias
                + 2 * b_pad * out_lanes * 4)           # output

    out_padded = pl.pallas_call(
        kernel,
        out_shape=jax.ShapeDtypeStruct((b_pad, out_lanes), jnp.float32),
        grid_spec=grid_spec,
        compiler_params=pltpu.CompilerParams(
            dimension_semantics=("arbitrary",),            # state carried across layers
            vmem_limit_bytes=_vmem_limit_bytes(resident),  # per-generation budget
        ),
    )(jnp.asarray(offs), jnp.asarray(cuts), adj_p.astype(jnp.bfloat16), x0, w_cat, b_stk)

    return out_padded[:batch_size, :max_len]   # (batch, max_len) == PyTorch out.squeeze(-1)


# ---------------- parameter init (PyG GraphConv-style) ----------------

def init_graphconv_params(key, f_in, f_out):
    k1, k2, k3 = jax.random.split(key, 3)
    bound = 1.0 / np.sqrt(f_in)
    w_rel = jax.random.uniform(k1, (f_in, f_out), jnp.float32, -bound, bound)
    w_root = jax.random.uniform(k2, (f_in, f_out), jnp.float32, -bound, bound)
    b_rel = jax.random.uniform(k3, (f_out,), jnp.float32, -bound, bound)
    W_rel = jnp.zeros((F_PAD, F_PAD), jnp.float32).at[:f_in, :f_out].set(w_rel)
    W_root = jnp.zeros((F_PAD, F_PAD), jnp.float32).at[:f_in, :f_out].set(w_root)
    B_rel = jnp.zeros((1, F_PAD), jnp.float32).at[0, :f_out].set(b_rel)
    return W_rel, W_root, B_rel


# ---------------- numpy reference (mirrors the kernel's bf16 operand precision) ----------------

def _bf16_round64(v):
    return np.asarray(jnp.asarray(np.asarray(v, np.float32)).astype(jnp.bfloat16)
                      .astype(jnp.float32), np.float64)


def reference_forward_np(params, adj, flat_c, cut, max_len):
    a = _bf16_round64(adj)                       # adjacency fed to the MXU as bf16
    n = a.shape[0]
    x0 = np.zeros((n, F_PAD), np.float64)
    x0[:np.asarray(flat_c).shape[0], 0] = np.asarray(flat_c, np.float64)
    x_bf = _bf16_round64(x0)                     # state carried in bf16 in the kernel
    new_x = x_bf
    for (w_rel, w_root, b_rel) in params:
        wr = _bf16_round64(w_rel)
        wo = _bf16_round64(w_root)
        bb = np.asarray(b_rel, np.float64)
        agg = a @ x_bf
        new_x = _bf16_round64(agg) @ wr + x_bf @ wo + bb     # f32-accumulated in the kernel
        x_bf = _bf16_round64(new_x)              # x.relu() in the reference is a no-op
    y = new_x[:, 0]
    offs = np.concatenate([[0], np.cumsum(cut)[:-1]]).astype(np.int64)
    rows = []
    for off, c in zip(offs, cut):
        seg = np.zeros(max_len, np.float64)
        seg[:c] = y[off:off + c]
        rows.append(seg - y[off])                # subtract node-0 (pads become -node0)
    return np.stack(rows, axis=0)


if __name__ == "__main__":
    key = jax.random.PRNGKey(0)

    # args: conv_in_dim=1 (forced by x = flat_c.view(-1,1)), conv_out_dim=1 (forced by squeeze(-1))
    conv_in_dim, conv_hi_dim, conv_out_dim = 1, 32, 1
    n_convs = 3
    max_len = 16
    node_counts = [10, 12]          # == delays[i].size per graph
    batch_size = len(node_counts)
    n_total = sum(node_counts)

    k_c, k_w, k_p = jax.random.split(key, 3)

    # data.c concatenated -> flat node features
    flat_c = jax.random.normal(k_c, (n_total,), jnp.float32)

    # edge_index / edge_weight: bidirectional ring within each graph (global node numbering)
    src, dst, off = [], [], 0
    for n_i in node_counts:
        for j in range(n_i):
            a_, b_ = off + j, off + (j + 1) % n_i
            src += [a_, b_]
            dst += [b_, a_]
        off += n_i
    src = np.asarray(src)
    dst = np.asarray(dst)
    edge_weight = jax.random.uniform(k_w, (src.shape[0],), jnp.float32, 0.1, 1.0)
    # dense adjacency for the scatter-add aggregation: agg[dst] += w * x[src]
    adj = jnp.zeros((n_total, n_total), jnp.float32).at[dst, src].add(edge_weight)

    # conv parameters (mlps / readout exist in __init__ but are unused in forward)
    dims = [conv_in_dim] + [conv_hi_dim] * (n_convs - 1) + [conv_out_dim]
    keys = jax.random.split(k_p, n_convs)
    params = [init_graphconv_params(keys[i], dims[i], dims[i + 1]) for i in range(n_convs)]

    out = graphsage_forward(params, adj, flat_c, node_counts, max_len)
    out = jax.block_until_ready(out)
    assert out.shape == (batch_size, max_len), out.shape
    assert bool(jnp.all(jnp.isfinite(out)))

    # correctness check against a numpy reference of the original math
    # (tolerance covers bf16 operand rounding inside the MXU, an intentional perf choice)
    ref = reference_forward_np(params, np.asarray(adj), np.asarray(flat_c), node_counts, max_len)
    err = float(np.abs(np.asarray(out, np.float64) - ref).max())
    assert np.allclose(np.asarray(out, np.float64), ref, rtol=5e-2, atol=1e-1), err

    print("KERNEL_OK")
</pallas_src>

<mosaic_0001>
module attributes {stable_mosaic.version = 11 : i64} {
  func.func @_graphsage_kernel(%arg0: i32, %arg1: memref<2xi32, #tpu.memory_space<smem>>, %arg2: memref<2xi32, #tpu.memory_space<smem>>, %arg3: memref<32x32xbf16, #tpu.memory_space<any>>, %arg4: memref<32x128xbf16, #tpu.memory_space<vmem>>, %arg5: memref<1x256x128xbf16, #tpu.memory_space<vmem>>, %arg6: memref<1x1x128xf32, #tpu.memory_space<vmem>>, %arg7: memref<8x128xf32, #tpu.memory_space<vmem>>, %arg8: memref<32x32xbf16, #tpu.memory_space<vmem>>, %arg9: memref<1x!tpu.dma_semaphore, #tpu.memory_space<semaphore_mem>>, %arg10: memref<32x256xbf16, #tpu.memory_space<vmem>>, %arg11: memref<32x128xf32, #tpu.memory_space<vmem>>) attributes {dimension_semantics = [#tpu.dimension_semantics<arbitrary>], iteration_bounds = array<i64: 3>, scalar_prefetch = 2 : i64, scratch_operands = 4 : i64, tpu.core_type = #tpu.core_type<tc>, window_params = [{}, {pipeline_mode = #tpu.pipeline_mode<synchronous>, transform_indices = @transform_1, window_bounds = array<i64: 32, 128>}, {transform_indices = @transform_2, window_bounds = array<i64: 1, 256, 128>}, {transform_indices = @transform_3, window_bounds = array<i64: 1, 1, 128>}, {pipeline_mode = #tpu.pipeline_mode<synchronous>, transform_indices = @transform_4, window_bounds = array<i64: 8, 128>}]} {
    %c0_i32 = arith.constant 0 : i32
    %0 = arith.cmpi eq, %arg0, %c0_i32 : i32
    %1 = arith.extui %0 : i1 to i32
    %c0_i32_0 = arith.constant 0 : i32
    %2 = arith.cmpi ne, %1, %c0_i32_0 : i32
    scf.if %2 {
      %c0_i32_17 = arith.constant 0 : i32
      %21 = tpu.memref_slice %arg9[%c0_i32_17] : memref<1x!tpu.dma_semaphore, #tpu.memory_space<semaphore_mem>> -> memref<1x!tpu.dma_semaphore, #tpu.memory_space<semaphore_mem>>
      %22 = tpu.memref_squeeze %21 : memref<1x!tpu.dma_semaphore, #tpu.memory_space<semaphore_mem>> -> memref<!tpu.dma_semaphore, #tpu.memory_space<semaphore_mem>>
      tpu.enqueue_dma source(%arg3 : memref<32x32xbf16, #tpu.memory_space<any>>) target(%arg8 : memref<32x32xbf16, #tpu.memory_space<vmem>>) target_semaphore(%22 : memref<!tpu.dma_semaphore, #tpu.memory_space<semaphore_mem>>)
      %c0_18 = arith.constant 0 : index
      %c0_19 = arith.constant 0 : index
      %23 = vector.load %arg4[%c0_18, %c0_19] : memref<32x128xbf16, #tpu.memory_space<vmem>>, vector<32x128xbf16>
      %c0_20 = arith.constant 0 : index
      %c128_21 = arith.constant 128 : index
      %24 = vector.load %arg10[%c0_20, %c128_21] : memref<32x256xbf16, #tpu.memory_space<vmem>>, vector<32x128xbf16>
      tpu.vector_store %arg10[%c0_20, %c128_21], %23 {strides = array<i32>} : memref<32x256xbf16, #tpu.memory_space<vmem>>, vector<32x128xbf16>,
      %c0_i32_22 = arith.constant 0 : i32
      %25 = tpu.memref_slice %arg9[%c0_i32_22] : memref<1x!tpu.dma_semaphore, #tpu.memory_space<semaphore_mem>> -> memref<1x!tpu.dma_semaphore, #tpu.memory_space<semaphore_mem>>
      %26 = tpu.memref_squeeze %25 : memref<1x!tpu.dma_semaphore, #tpu.memory_space<semaphore_mem>> -> memref<!tpu.dma_semaphore, #tpu.memory_space<semaphore_mem>>
      tpu.wait_dma2 semaphore(%26 : memref<!tpu.dma_semaphore, #tpu.memory_space<semaphore_mem>>) src(%arg3 : memref<32x32xbf16, #tpu.memory_space<any>>) dst(%arg8 : memref<32x32xbf16, #tpu.memory_space<vmem>>)
    } else {
    }
    %c0 = arith.constant 0 : index
    %c128 = arith.constant 128 : index
    %3 = vector.load %arg10[%c0, %c128] : memref<32x256xbf16, #tpu.memory_space<vmem>>, vector<32x128xbf16>
    %c0_1 = arith.constant 0 : index
    %c0_2 = arith.constant 0 : index
    %4 = vector.load %arg8[%c0_1, %c0_2] : memref<32x32xbf16, #tpu.memory_space<vmem>>, vector<32x32xbf16>
    %cst = arith.constant dense<0.000000e+00> : vector<32x128xf32>
    %5 = tpu.matmul %4, %3, %cst {dimension_numbers = #tpu.dot_dimension_numbers<[1], [0], [0], [1], [0, 0, 1, 1], [], []>} : vector<32x32xbf16>, vector<32x128xbf16>, vector<32x128xf32> -> vector<32x128xf32>
    %6 = arith.truncf %5 : vector<32x128xf32> to vector<32x128xbf16>
    %c0_3 = arith.constant 0 : index
    %c0_4 = arith.constant 0 : index
    %7 = vector.load %arg10[%c0_3, %c0_4] : memref<32x256xbf16, #tpu.memory_space<vmem>>, vector<32x128xbf16>
    tpu.vector_store %arg10[%c0_3, %c0_4], %6 {strides = array<i32>} : memref<32x256xbf16, #tpu.memory_space<vmem>>, vector<32x128xbf16>,
    %c0_5 = arith.constant 0 : index
    %c0_6 = arith.constant 0 : index
    %8 = vector.load %arg10[%c0_5, %c0_6] : memref<32x256xbf16, #tpu.memory_space<vmem>>, vector<32x256xbf16>
    %c0_7 = arith.constant 0 : index
    %c0_8 = arith.constant 0 : index
    %c0_9 = arith.constant 0 : index
    %9 = vector.load %arg5[%c0_7, %c0_8, %c0_9] : memref<1x256x128xbf16, #tpu.memory_space<vmem>>, vector<1x256x128xbf16>
    %10 = vector.shape_cast %9 : vector<1x256x128xbf16> to vector<256x128xbf16>
    %cst_10 = arith.constant dense<0.000000e+00> : vector<32x128xf32>
    %11 = tpu.matmul %8, %10, %cst_10 {dimension_numbers = #tpu.dot_dimension_numbers<[1], [0], [0], [1], [0, 0, 1, 1], [], []>} : vector<32x256xbf16>, vector<256x128xbf16>, vector<32x128xf32> -> vector<32x128xf32>
    %c0_11 = arith.constant 0 : index
    %c0_12 = arith.constant 0 : index
    %c0_13 = arith.constant 0 : index
    %12 = vector.load %arg6[%c0_11, %c0_12, %c0_13] : memref<1x1x128xf32, #tpu.memory_space<vmem>>, vector<1x1x128xf32>
    %13 = vector.shape_cast %12 : vector<1x1x128xf32> to vector<1x128xf32>
    %14 = vector.broadcast %13 : vector<1x128xf32> to vector<32x128xf32>
    %15 = arith.addf %11, %14 : vector<32x128xf32>
    %16 = arith.truncf %15 : vector<32x128xf32> to vector<32x128xbf16>
    %c0_14 = arith.constant 0 : index
    %c128_15 = arith.constant 128 : index
    %17 = vector.load %arg10[%c0_14, %c128_15] : memref<32x256xbf16, #tpu.memory_space<vmem>>, vector<32x128xbf16>
    tpu.vector_store %arg10[%c0_14, %c128_15], %16 {strides = array<i32>} : memref<32x256xbf16, #tpu.memory_space<vmem>>, vector<32x128xbf16>,
    %c2_i32 = arith.constant 2 : i32
    %18 = arith.cmpi eq, %arg0, %c2_i32 : i32
    %19 = arith.extui %18 : i1 to i32
    %c0_i32_16 = arith.constant 0 : i32
    %20 = arith.cmpi ne, %19, %c0_i32_16 : i32
    scf.if %20 {
      %c0_17 = arith.constant 0 : index
      %c0_18 = arith.constant 0 : index
      %21 = vector.load %arg11[%c0_17, %c0_18] : memref<32x128xf32, #tpu.memory_space<vmem>>, vector<32x128xf32>
      tpu.vector_store %arg11[%c0_17, %c0_18], %15 {strides = array<i32>} : memref<32x128xf32, #tpu.memory_space<vmem>>, vector<32x128xf32>,
      %22 = tpu.iota {dimensions = array<i32: 0>} : vector<16x1xi32>
      %23 = tpu.iota {dimensions = array<i32: 0>} : vector<16x128xi32>
      %24 = tpu.iota {dimensions = array<i32: 1>} : vector<16x128xi32>
      %25 = arith.cmpi eq, %23, %24 : vector<16x128xi32>
      %26 = arith.extui %25 : vector<16x128xi1> to vector<16x128xi32>
      %27 = arith.sitofp %26 : vector<16x128xi32> to vector<16x128xf32>
      %c0_19 = arith.constant 0 : index
      %28 = memref.load %arg1[%c0_19] : memref<2xi32, #tpu.memory_space<smem>>
      %c0_20 = arith.constant 0 : index
      %29 = memref.load %arg2[%c0_20] : memref<2xi32, #tpu.memory_space<smem>>
      %30 = arith.index_cast %28 : i32 to index
      %c0_21 = arith.constant 0 : index
      %31 = vector.load %arg11[%30, %c0_21] : memref<32x128xf32, #tpu.memory_space<vmem>>, vector<16x128xf32>
      %32 = vector.extract_strided_slice %31 {offsets = [0, 0], sizes = [16, 1], strides = [1, 1]} : vector<16x128xf32> to vector<16x1xf32>
      %33 = vector.extract_strided_slice %32 {offsets = [0, 0], sizes = [1, 1], strides = [1, 1]} : vector<16x1xf32> to vector<1x1xf32>
      %34 = vector.broadcast %29 : i32 to vector<16x1xi32>
      %35 = arith.cmpi slt, %22, %34 : vector<16x1xi32>
      %cst_22 = arith.constant 0.000000e+00 : f32
      %36 = vector.broadcast %cst_22 : f32 to vector<16x1xf32>
      %37 = arith.select %35, %32, %36 : vector<16x1xi1>, vector<16x1xf32>
      %38 = vector.broadcast %33 : vector<1x1xf32> to vector<16x1xf32>
      %39 = arith.subf %37, %38 : vector<16x1xf32>
      %40 = vector.broadcast %39 : vector<16x1xf32> to vector<16x128xf32>
      %41 = arith.mulf %40, %27 : vector<16x128xf32>
      %cst_23 = arith.constant dense<0.000000e+00> : vector<128xf32>
      %42 = vector.multi_reduction <add>, %41, %cst_23 [0] : vector<16x128xf32> to vector<128xf32>
      %43 = vector.shape_cast %42 : vector<128xf32> to vector<1x128xf32>
      %c1 = arith.constant 1 : index
      %44 = memref.load %arg1[%c1] : memref<2xi32, #tpu.memory_space<smem>>
      %c1_24 = arith.constant 1 : index
      %45 = memref.load %arg2[%c1_24] : memref<2xi32, #tpu.memory_space<smem>>
      %46 = arith.index_cast %44 : i32 to index
      %c0_25 = arith.constant 0 : index
      %47 = vector.load %arg11[%46, %c0_25] : memref<32x128xf32, #tpu.memory_space<vmem>>, vector<16x128xf32>
      %48 = vector.extract_strided_slice %47 {offsets = [0, 0], sizes = [16, 1], strides = [1, 1]} : vector<16x128xf32> to vector<16x1xf32>
      %49 = vector.extract_strided_slice %48 {offsets = [0, 0], sizes = [1, 1], strides = [1, 1]} : vector<16x1xf32> to vector<1x1xf32>
      %50 = vector.broadcast %45 : i32 to vector<16x1xi32>
      %51 = arith.cmpi slt, %22, %50 : vector<16x1xi32>
      %cst_26 = arith.constant 0.000000e+00 : f32
      %52 = vector.broadcast %cst_26 : f32 to vector<16x1xf32>
      %53 = arith.select %51, %48, %52 : vector<16x1xi1>, vector<16x1xf32>
      %54 = vector.broadcast %49 : vector<1x1xf32> to vector<16x1xf32>
      %55 = arith.subf %53, %54 : vector<16x1xf32>
      %56 = vector.broadcast %55 : vector<16x1xf32> to vector<16x128xf32>
      %57 = arith.mulf %56, %27 : vector<16x128xf32>
      %cst_27 = arith.constant dense<0.000000e+00> : vector<128xf32>
      %58 = vector.multi_reduction <add>, %57, %cst_27 [0] : vector<16x128xf32> to vector<128xf32>
      %59 = vector.shape_cast %58 : vector<128xf32> to vector<1x128xf32>
      %cst_28 = arith.constant 0.000000e+00 : f32
      %60 = vector.broadcast %cst_28 : f32 to vector<6x128xf32>
      %61 = tpu.concatenate %43, %59, %60 in 0 : vector<1x128xf32>, vector<1x128xf32>, vector<6x128xf32> -> vector<8x128xf32>
      %c0_29 = arith.constant 0 : index
      %c0_30 = arith.constant 0 : index
      %62 = vector.load %arg7[%c0_29, %c0_30] : memref<8x128xf32, #tpu.memory_space<vmem>>, vector<8x128xf32>
      tpu.vector_store %arg7[%c0_29, %c0_30], %61 {strides = array<i32>} : memref<8x128xf32, #tpu.memory_space<vmem>>, vector<8x128xf32>,
    } else {
    }
    return
  }
  func.func @transform_1(%arg0: i32, %arg1: memref<2xi32, #tpu.memory_space<smem>>, %arg2: memref<2xi32, #tpu.memory_space<smem>>) -> (i32, i32) {
    %c0_i32 = arith.constant 0 : i32
    %c0_i32_0 = arith.constant 0 : i32
    %c0_i32_1 = arith.constant 0 : i32
    return %c0_i32, %c0_i32_0 : i32, i32
  }
  func.func @transform_2(%arg0: i32, %arg1: memref<2xi32, #tpu.memory_space<smem>>, %arg2: memref<2xi32, #tpu.memory_space<smem>>) -> (i32, i32, i32) {
    %c0_i32 = arith.constant 0 : i32
    %c0_i32_0 = arith.constant 0 : i32
    %c0_i32_1 = arith.constant 0 : i32
    return %arg0, %c0_i32, %c0_i32_0 : i32, i32, i32
  }
  func.func @transform_3(%arg0: i32, %arg1: memref<2xi32, #tpu.memory_space<smem>>, %arg2: memref<2xi32, #tpu.memory_space<smem>>) -> (i32, i32, i32) {
    %c0_i32 = arith.constant 0 : i32
    %c0_i32_0 = arith.constant 0 : i32
    %c0_i32_1 = arith.constant 0 : i32
    return %arg0, %c0_i32, %c0_i32_0 : i32, i32, i32
  }
  func.func @transform_4(%arg0: i32, %arg1: memref<2xi32, #tpu.memory_space<smem>>, %arg2: memref<2xi32, #tpu.memory_space<smem>>) -> (i32, i32) {
    %c0_i32 = arith.constant 0 : i32
    %c0_i32_0 = arith.constant 0 : i32
    %c0_i32_1 = arith.constant 0 : i32
    return %c0_i32, %c0_i32_0 : i32, i32
  }
}

</mosaic_0001>

<llo_original>
// kernel: tpu_custom_call.1
$region0: #{tpu_custom_call.1}
  #allocation0 [shape = 'u32[]', space=smem, size = 0x4, offset = 0x4, fixed_abs, tag = 'smem constant byte address 0x4 - core index']
  #allocation1 [shape = 'u32[144,128]{1,0:T(1,128)}', space=vmem, size = 0x12000, scoped, tag = 'internal scratch']
  #allocation2 [shape = 'bf16[32,32]{1,0:T(16,128)(2,1)}', space=vmem, size = 0x2000, scoped, tag = 'scratch operand']
  #allocation3 [shape = 's32[1]{0}', space=sflag, size = 0x4, scoped, tag = 'scratch operand']
  #allocation4 [shape = 'bf16[32,256]{1,0:T(16,128)(2,1)}', space=vmem, size = 0x4000, scoped, tag = 'scratch operand']
  #allocation5 [shape = 'f32[32,128]{1,0:T(8,128)}', space=vmem, size = 0x4000, scoped, tag = 'scratch operand']
  #allocation6 [shape = 's32[1]{0}', space=sflag, size = 0x4, scoped, tag = 'scoped memory for tpu_custom_call.1']
  #allocation7 [shape = 'u8[512]{0}', space=smem, size = 0x200, scoped, tag = 'prefetched SMEM operand 0']
  #allocation8 [shape = 'u8[512]{0}', space=smem, size = 0x200, scoped, tag = 'prefetched SMEM operand 1']
  #allocation15 [shape = 's32[]', space=sflag, size = 0x4, offset = 0, fixed_abs, tag = 'sflag constant byte address 0x0 - dummy sync flag']
  #allocation16 [shape = 's32[]', space=sflag, size = 0x4, offset = 0, fixed_abs, tag = 'sflag constant byte address 0x0 - dummy sync flag']
  #allocation17 [shape = 'u32[]', space=smem, size = 0x4, offset = 0x44, fixed_abs, tag = 'smem constant byte address 0x44 - assertion arg 0']
  #allocation18 [shape = 'u32[]', space=smem, size = 0x4, offset = 0x48, fixed_abs, tag = 'smem constant byte address 0x48 - assertion arg 1']
  %s0 = inlined_call_operand.hbm [shape: s32[2], index: 0, kind: input, shape index: {}]
  %s1 = inlined_call_operand.vmem [shape: s32[2], index: 1, kind: input, shape index: {}]
  %s2 = inlined_call_operand.hbm [shape: bf16[32,32], index: 2, kind: input, shape index: {}]
  %s3 = inlined_call_operand.hbm [shape: bf16[32,128], index: 3, kind: input, shape index: {}]
  %s4 = inlined_call_operand.hbm [shape: bf16[3,256,128], index: 4, kind: input, shape index: {}]
  %s5 = inlined_call_operand.vmem [shape: f32[3,1,128], index: 5, kind: input, shape index: {}]
  %s6 = inlined_call_operand.hbm [shape: f32[8,128], index: 6, kind: output, shape index: {}]
  %s7 = sld [smem:[#allocation0]]
  $region65: #{tpu_custom_call.1} parent=0
    _
  %s9 = ssub.s32 1, %s7
  %s10 = scalar_select 0, %s9, %s7
  %12 = dma.hbm_to_smem %s0, 16, [#allocation7], [#allocation6]
  %s13 = sshll.u32 %s1, 4
  %s14 = int_to_ptr.vmem [resolvable:$true] %s13
  %16 = dma.vmem_to_smem %s14, 16, [#allocation8], [#allocation6]
  %17 = dma.done [#allocation6], 32
  %18 = sfence
  $region1: #{tpu_custom_call.1} parent=0
    #allocation9 [shape = 'u8[8192]{0}', space=vmem, size = 0x2000, scoped, tag = 'input window, operand 3, single buffered']
    #allocation10 [shape = 's32[2]{0}', space=sflag, size = 0x8, scoped, tag = 'scoped memory for tpu_custom_call.1']
    #allocation11 [shape = 's32[2]{0}', space=sflag, size = 0x8, scoped, tag = 'scoped memory for tpu_custom_call.1']
    #allocation12 [shape = 'u8[131072]{0}', space=vmem, size = 0x20000, scoped, tag = 'input window, operand 4']
    #allocation13 [shape = 's32[2]{0}', space=sflag, size = 0x8, scoped, tag = 'scoped memory for tpu_custom_call.1']
    #allocation14 [shape = 'u8[4096]{0}', space=vmem, size = 0x1000, scoped, tag = 'output window, operand 0, single buffered']
    %19 = vsyncpa [#allocation10], 0
    %20 = vsyncpa [#allocation13], 0
    %s21 = scalar_lea.sflag [#allocation13], 1
    %22 = vsyncpa %s21, 0
    %23 = vsyncpa [#allocation11], 0
    loop: start=0, step=1, limit=5
    $region2: #{tpu_custom_call.1} parent=1 // loop_pre_header
      _
    $region3: #{tpu_custom_call.1} parent=1 // loop_header
      %s25 = sphi 0, %s29
      %p26 = scmp.ge.s32.totalorder %s25, 5
      %s33 = sphi 0, %s33
      %s35 = sphi 0, %s33
      %s36 = sphi 0, %s35
      %s50 = sphi 0, %s36
      %s56 = sphi 0, %s58
      %s59 = sphi 0, %s56
      %s60 = sphi 0, %s59
      %s76 = sphi 0, %s60
      %s82 = sphi 0, %s84
      %s85 = sphi 0, %s82
      %s86 = sphi 0, %s85
      %s102 = sphi 0, %s86
      %s106 = sphi 0, %s106
      %s108 = sphi 0, %s106
      %s109 = sphi 0, %s108
      %s123 = sphi 0, %s109
    $region4: #{tpu_custom_call.1} parent=1 // loop_header_branch
      %28 = sbr.rel (%p26) target = $region8
    $region5: #{tpu_custom_call.1} parent=1 // loop_body
      %s30 = ssub.s32 %s25, 1
      %s31 = ssub.s32 %s25, 2
      %s32 = sadd.s32 %s25, 1
      %s34 = sadd.s32 %s33, 1
      %p37 = scmp.eq.s32.totalorder %s25, 2
      %p38 = scmp.ne.s32.totalorder %s33, %s35
      %p39 = scmp.eq.s32.totalorder %s25, 0
      %p40 = por %p38, %p39
      %p41 = scmp.ne.s32.totalorder %s33, %s35
      %p42 = scmp.eq.s32.totalorder %s30, 2
      %p43 = por %p41, %p42
      %p44 = scmp.ne.s32.totalorder %s35, %s36
      %p45 = scmp.eq.s32.totalorder %s30, 0
      %p46 = por %p44, %p45
      %p47 = scmp.ne.s32.totalorder %s35, %s36
      %p48 = scmp.eq.s32.totalorder %s31, 2
      %p49 = por %p47, %p48
      %p51 = scmp.ne.s32.totalorder %s36, %s50
      %p52 = scmp.eq.s32.totalorder %s31, 0
      %p53 = por %p51, %p52
      %s54 = ssub.s32 %s25, %s32
      %p55 = scmp.eq.s32.totalorder %s54, 0
      %s57 = sadd.s32 %s56, 1
      %s58 = scalar_select %p55, %s56, %s57
      %p61 = pneg %p55
      %p62 = scmp.eq.s32.totalorder %s25, 2
      %p63 = por %p61, %p62
      %p64 = scmp.ne.s32.totalorder %s56, %s59
      %p65 = scmp.eq.s32.totalorder %s25, 0
      %p66 = por %p64, %p65
      %p67 = scmp.ne.s32.totalorder %s56, %s59
      %p68 = scmp.eq.s32.totalorder %s30, 2
      %p69 = por %p67, %p68
      %p70 = scmp.ne.s32.totalorder %s59, %s60
      %p71 = scmp.eq.s32.totalorder %s30, 0
      %p72 = por %p70, %p71
      %p73 = scmp.ne.s32.totalorder %s59, %s60
      %p74 = scmp.eq.s32.totalorder %s31, 2
      %p75 = por %p73, %p74
      %p77 = scmp.ne.s32.totalorder %s60, %s76
      %p78 = scmp.eq.s32.totalorder %s31, 0
      %p79 = por %p77, %p78
      %s80 = ssub.s32 %s25, %s32
      %p81 = scmp.eq.s32.totalorder %s80, 0
      %s83 = sadd.s32 %s82, 1
      %s84 = scalar_select %p81, %s82, %s83
      %p87 = pneg %p81
      %p88 = scmp.eq.s32.totalorder %s25, 2
      %p89 = por %p87, %p88
      %p90 = scmp.ne.s32.totalorder %s82, %s85
      %p91 = scmp.eq.s32.totalorder %s25, 0
      %p92 = por %p90, %p91
      %p93 = scmp.ne.s32.totalorder %s82, %s85
      %p94 = scmp.eq.s32.totalorder %s30, 2
      %p95 = por %p93, %p94
      %p96 = scmp.ne.s32.totalorder %s85, %s86
      %p97 = scmp.eq.s32.totalorder %s30, 0
      %p98 = por %p96, %p97
      %p99 = scmp.ne.s32.totalorder %s85, %s86
      %p100 = scmp.eq.s32.totalorder %s31, 2
      %p101 = por %p99, %p100
      %p103 = scmp.ne.s32.totalorder %s86, %s102
      %p104 = scmp.eq.s32.totalorder %s31, 0
      %p105 = por %p103, %p104
      %s107 = sadd.s32 %s106, 1
      %p110 = scmp.eq.s32.totalorder %s25, 2
      %p111 = scmp.ne.s32.totalorder %s106, %s108
      %p112 = scmp.eq.s32.totalorder %s25, 0
      %p113 = por %p111, %p112
      %p114 = scmp.ne.s32.totalorder %s106, %s108
      %p115 = scmp.eq.s32.totalorder %s30, 2
      %p116 = por %p114, %p115
      %p117 = scmp.ne.s32.totalorder %s108, %s109
      %p118 = scmp.eq.s32.totalorder %s30, 0
      %p119 = por %p117, %p118
      %p120 = scmp.ne.s32.totalorder %s108, %s109
      %p121 = scmp.eq.s32.totalorder %s31, 2
      %p122 = por %p120, %p121
      %p124 = scmp.ne.s32.totalorder %s109, %s123
      %p125 = scmp.eq.s32.totalorder %s31, 0
      %p126 = por %p124, %p125
      %p127 = scmp.le.s32.totalorder 1, %s25
      %p128 = scmp.lt.s32.totalorder %s25, 4
      %p129 = pnand %p127, %p128
      %p130 = pneg %p129
      // Predicated region
      $region9: #{tpu_custom_call.1} parent=5 // pred_check
        _
      $region10: #{tpu_custom_call.1} parent=5 // pred_check_branch
        %132 = sbr.rel (%p129) target = $region12
      $region11: #{tpu_custom_call.1} parent=5 // pred_region
        %s133 = ssub.s32 %s25, 1
        // Predicated region
        $region13: #{tpu_custom_call.1} parent=11 // pred_check
          %p134 = pneg %p46
        $region14: #{tpu_custom_call.1} parent=11 // pred_check_branch
          %136 = sbr.rel (%p134) target = $region16
        $region15: #{tpu_custom_call.1} parent=11 // pred_region
          %s138 = ssub.s32 256, 256
          %139 = vsyncadd [#allocation10], %s138
          %s140 = sshll.u32 [#allocation9], 4
          %s141 = int_to_ptr.vmem [resolvable:$true] %s140
          %146 = dma.hbm_to_vmem [thread:$0]  %s3, 256, %s141, [#allocation10], 64, 64, 4
        $region16: #{tpu_custom_call.1} parent=11 // pred_fallthru
          _
      $region12: #{tpu_custom_call.1} parent=5 // pred_fallthru
        _
      %p147 = scmp.lt.s32.totalorder %s25, 3
      // Predicated region
      $region17: #{tpu_custom_call.1} parent=5 // pred_check
        %p148 = pneg %p147
      $region18: #{tpu_custom_call.1} parent=5 // pred_check_branch
        %150 = sbr.rel (%p148) target = $region20
      $region19: #{tpu_custom_call.1} parent=5 // pred_region
        // Predicated region
        $region21: #{tpu_custom_call.1} parent=19 // pred_check
          %p151 = pneg %p66
        $region22: #{tpu_custom_call.1} parent=19 // pred_check_branch
          %153 = sbr.rel (%p151) target = $region24
        $region23: #{tpu_custom_call.1} parent=19 // pred_region
          %s154 = sand.u32 %s56, 1
          %s155 = scalar_lea.sflag [#allocation13], %s154
          %s156 = sand.u32 %s56, 1
          %s157 = smul.addr %s156, 128
          %s158 = scalar_lea.vmem [#allocation12], %s157
          %s160 = ssub.s32 2048, 2048
          %161 = vsyncadd %s155, %s160
          %s162 = smul.addr %s25, 32
          %s163 = smul.addr %s162, 64
          %s164 = scalar_lea.hbm %s4, %s163
          %s165 = sshll.u32 %s158, 4
          %s166 = int_to_ptr.vmem [resolvable:$true] %s165
          %171 = dma.hbm_to_vmem [thread:$0]  %s164, 2048, %s166, %s155, 64, 64, 4
        $region24: #{tpu_custom_call.1} parent=19 // pred_fallthru
          _
        // Predicated region
        $region25: #{tpu_custom_call.1} parent=19 // pred_check
          %p172 = pneg %p92
        $region26: #{tpu_custom_call.1} parent=19 // pred_check_branch
          %174 = sbr.rel (%p172) target = $region28
        $region27: #{tpu_custom_call.1} parent=19 // pred_region
          %p175 = scmp.lt.s32.totalorder %s25, 2
          %s176 = scalar_select %p175, %s25, 2
          %s177 = scalar_lea.vmem %s5, %s176
        $region28: #{tpu_custom_call.1} parent=19 // pred_fallthru
          _
      $region20: #{tpu_custom_call.1} parent=5 // pred_fallthru
        _
      %p178 = scmp.le.s32.totalorder 1, %s25
      %p179 = scmp.lt.s32.totalorder %s25, 4
      %p180 = pnand %p178, %p179
      %p181 = pneg %p180
      // Predicated region
      $region29: #{tpu_custom_call.1} parent=5 // pred_check
        _
      $region30: #{tpu_custom_call.1} parent=5 // pred_check_branch
        %183 = sbr.rel (%p180) target = $region32
      $region31: #{tpu_custom_call.1} parent=5 // pred_region
        %s184 = ssub.s32 %s25, 1
        // Predicated region
        $region33: #{tpu_custom_call.1} parent=31 // pred_check
          %p185 = pneg %p46
        $region34: #{tpu_custom_call.1} parent=31 // pred_check_branch
          %187 = sbr.rel (%p185) target = $region36
        $region35: #{tpu_custom_call.1} parent=31 // pred_region
          %188 = dma.done [#allocation10], 256
        $region36: #{tpu_custom_call.1} parent=31 // pred_fallthru
          _
        %s189 = sand.u32 %s59, 1
        %s190 = scalar_lea.sflag [#allocation13], %s189
        %s191 = sand.u32 %s59, 1
        %s192 = smul.addr %s191, 128
        %s193 = scalar_lea.vmem [#allocation12], %s192
        // Predicated region
        $region37: #{tpu_custom_call.1} parent=31 // pred_check
          %p194 = pneg %p72
        $region38: #{tpu_custom_call.1} parent=31 // pred_check_branch
          %196 = sbr.rel (%p194) target = $region40
        $region39: #{tpu_custom_call.1} parent=31 // pred_region
          %197 = dma.done %s190, 2048
        $region40: #{tpu_custom_call.1} parent=31 // pred_fallthru
          _
        %p198 = pneg %p46
        %p199 = pneg %p43
        %s200 = sand.u32 %s59, 1
        %s201 = scalar_lea.sflag [#allocation13], %s200
        %s202 = sand.u32 %s59, 1
        %s203 = smul.addr %s202, 128
        %s204 = scalar_lea.vmem [#allocation12], %s203
        %p205 = pneg %p72
        %p206 = pneg %p69
        %p207 = scmp.lt.s32.totalorder %s30, 2
        %s208 = scalar_select %p207, %s30, 2
        %s209 = scalar_lea.vmem %s5, %s208
        %p210 = pneg %p98
        %p211 = pneg %p95
        %p212 = pneg %p119
        %p213 = pneg %p116
        %p214 = scmp.lt.s32.totalorder %s30, 2
        %s215 = scalar_select %p214, %s30, 2
        %s216 = scalar_lea.vmem %s5, %s215
        %p218 = scmp.eq.s32.totalorder %s30, 0
        // Predicated region
        $region41: #{tpu_custom_call.1} parent=31 // pred_check
          %p219 = pneg %p218
        $region42: #{tpu_custom_call.1} parent=31 // pred_check_branch
          %221 = sbr.rel (%p219) target = $region44
        $region43: #{tpu_custom_call.1} parent=31 // pred_region
          // Predicated region
          $region45: #{tpu_custom_call.1} parent=43 // pred_check
            _
          $region46: #{tpu_custom_call.1} parent=43 // pred_check_branch
            %223 = sbr.rel target = $region48
          $region47: #{tpu_custom_call.1} parent=43 // pred_region
            %224 = sst [smem:[#allocation17]] [#allocation16]
            %225 = sst [smem:[#allocation18]] [#allocation15]
          $region48: #{tpu_custom_call.1} parent=43 // pred_fallthru
            _
          %227 = shalt.err (0)
          %s229 = sshll.u32 [#allocation2], 4
          %s230 = int_to_ptr.vmem [resolvable:$true] %s229
          %232 = dma.hbm_to_vmem [thread:$0]  %s2, 256, %s230, [#allocation3]
          %v233 = vld [vmem:[#allocation9] sm:$0xf]
          %v234 = vld [vmem:[#allocation9 + $0x4] sm:$0xf]
          %v235 = vld [vmem:[#allocation9 + $0x8] sm:$0xf]
          %v236 = vld [vmem:[#allocation9 + $0xc] sm:$0xf]
          %v241 = vunpack.c.l.b16 %v233
          %v242 = vunpack.c.l.b16 %v234
          %v243 = vunpack.c.l.b16 %v235
          %v244 = vunpack.c.l.b16 %v236
          %v245 = vpack.c.b16 %v242, %v241
          %v246 = vpack.c.b16 %v244, %v243
          %249 = vst [vmem:[#allocation4 + $0x8] sm:$0xff] %v245
          %250 = vst [vmem:[#allocation4 + $0x18] sm:$0xff] %v246
          %s251 = smul.u32 4, 4
          %s252 = smul.u32 %s251, 1
          %s253 = sshll.u32 %s252, 4
          %254 = dma.done [#allocation3], %s253
        $region44: #{tpu_custom_call.1} parent=31 // pred_fallthru
          _
        %v255 = vld [vmem:[#allocation4 + $0x8] sm:$0xff]
        %v256 = vld [vmem:[#allocation4 + $0x18] sm:$0xff]
        %v257 = vld [vmem:[#allocation2] sm:$0xff]
        %v258 = vld [vmem:[#allocation2 + $0x8] sm:$0xff]
        %vm259 = vcmask 261120
        %v261 = vsel %vm259, %v257, 0
        %v264 = vsel %vm259, %v258, 0
        %266 = vmatprep.subr.bf16.mxu0 0
        %267 = vmatpush1.bf16.msra.mxu0 %v255
        %268 = vmatprep.subr.bf16.mxu0 0
        %269 = vmatpush1.bf16.msra.mxu0 %v256
        %270 = vmatprep.subr.bf16.mxu0 0
        %271 = vmatpush1.bf16.msra.mxu0 0
        %272 = vmatprep.subr.bf16.mxu0 0
        %273 = vmatpush1.bf16.msra.mxu0 0
        %274 = vmatprep.subr.bf16.mxu0 0
        %275 = vmatpush1.bf16.msra.mxu0 0
        %276 = vmatprep.subr.bf16.mxu0 0
        %277 = vmatpush1.bf16.msra.mxu0 0
        %278 = vmatprep.subr.bf16.mxu0 0
        %279 = vmatpush1.bf16.msra.mxu0 0
        %280 = vmatprep.subr.bf16.mxu0 0
        %281 = vmatpush1.bf16.msra.mxu0 0
        %282 = vmatprep.subr.bf16.mxu0 0
        %283 = vmatpush1.bf16.msra.mxu0 0
        %284 = vmatprep.subr.bf16.mxu0 0
        %285 = vmatpush1.bf16.msra.mxu0 0
        %286 = vmatprep.subr.bf16.mxu0 0
        %287 = vmatpush1.bf16.msra.mxu0 0
        %288 = vmatprep.subr.bf16.mxu0 0
        %289 = vmatpush1.bf16.msra.mxu0 0
        %290 = vmatprep.subr.bf16.mxu0 0
        %291 = vmatpush1.bf16.msra.mxu0 0
        %292 = vmatprep.subr.bf16.mxu0 0
        %293 = vmatpush1.bf16.msra.mxu0 0
        %294 = vmatprep.subr.bf16.mxu0 0
        %295 = vmatpush1.bf16.msra.mxu0 0
        %296 = vmatprep.subr.bf16.mxu0 0
        %297 = vmatpush1.bf16.msra.mxu0 0
        %298 = vmatprep.mubr.bf16.mxu0 0
        %299 = vmatmul.mubr.bf16.gmra.mrb[0].mxu0 %v261
        %v300 = vpop.f32.mrb[0].mxu0
        %v301 = vadd.f32 0.0, %v300
        %v302 = vpop.f32.mrb[0].mxu0
        %v303 = vpop.f32.mrb[0].mxu0
        %v304 = vadd.f32 0.0, %v303
        %v305 = vpop.f32.mrb[0].mxu0
        %306 = vmatprep.mubr.bf16.mxu0 0
        %307 = vmatmul.mubr.bf16.gmra.mrb[0].mxu0 %v264
        %v308 = vpop.f32.mrb[0].mxu0
        %v309 = vadd.f32 0.0, %v308
        %v310 = vpop.f32.mrb[0].mxu0
        %v311 = vpop.f32.mrb[0].mxu0
        %v312 = vadd.f32 0.0, %v311
        %v313 = vpop.f32.mrb[0].mxu0
        %314 = vdwg.mxu0
        %v315 = vpack.c.bf16 %v304, %v301
        %v316 = vpack.c.bf16 %v312, %v309
        %317 = vst [vmem:[#allocation4] sm:$0xff] %v315
        %318 = vst [vmem:[#allocation4 + $0x10] sm:$0xff] %v316
        %v319 = vld [vmem:[#allocation4] sm:$0xff]
        %v320 = vld [vmem:[#allocation4 + $0x8] sm:$0xff]
        %v321 = vld [vmem:[#allocation4 + $0x10] sm:$0xff]
        %v322 = vld [vmem:[#allocation4 + $0x18] sm:$0xff]
        %v323 = vld [vmem:[%s193] sm:$0xf]
        %v324 = vld [vmem:[%s193 + $0x4] sm:$0xf]
        %v325 = vld [vmem:[%s193 + $0x8] sm:$0xf]
        %v326 = vld [vmem:[%s193 + $0xc] sm:$0xf]
        %v327 = vld [vmem:[%s193 + $0x10] sm:$0xf]
        %v328 = vld [vmem:[%s193 + $0x14] sm:$0xf]
        %v329 = vld [vmem:[%s193 + $0x18] sm:$0xf]
        %v330 = vld [vmem:[%s193 + $0x1c] sm:$0xf]
        %v331 = vld [vmem:[%s193 + $0x20] sm:$0xf]
        %v332 = vld [vmem:[%s193 + $0x24] sm:$0xf]
        %v333 = vld [vmem:[%s193 + $0x28] sm:$0xf]
        %v334 = vld [vmem:[%s193 + $0x2c] sm:$0xf]
        %v335 = vld [vmem:[%s193 + $0x30] sm:$0xf]
        %v336 = vld [vmem:[%s193 + $0x34] sm:$0xf]
        %v337 = vld [vmem:[%s193 + $0x38] sm:$0xf]
        %v338 = vld [vmem:[%s193 + $0x3c] sm:$0xf]
        %v339 = vld [vmem:[%s193 + $0x40] sm:$0xf]
        %v340 = vld [vmem:[%s193 + $0x44] sm:$0xf]
        %v341 = vld [vmem:[%s193 + $0x48] sm:$0xf]
        %v342 = vld [vmem:[%s193 + $0x4c] sm:$0xf]
        %v343 = vld [vmem:[%s193 + $0x50] sm:$0xf]
        %v344 = vld [vmem:[%s193 + $0x54] sm:$0xf]
        %v345 = vld [vmem:[%s193 + $0x58] sm:$0xf]
        %v346 = vld [vmem:[%s193 + $0x5c] sm:$0xf]
        %v347 = vld [vmem:[%s193 + $0x60] sm:$0xf]
        %v348 = vld [vmem:[%s193 + $0x64] sm:$0xf]
        %v349 = vld [vmem:[%s193 + $0x68] sm:$0xf]
        %v350 = vld [vmem:[%s193 + $0x6c] sm:$0xf]
        %v351 = vld [vmem:[%s193 + $0x70] sm:$0xf]
        %v352 = vld [vmem:[%s193 + $0x74] sm:$0xf]
        %v353 = vld [vmem:[%s193 + $0x78] sm:$0xf]
        %v354 = vld [vmem:[%s193 + $0x7c] sm:$0xf]
        %v355 = vld [vmem:[%s216] sm:$0x1]
        %v357 = vlaneseq
        %v358 = vshrl.u32 %v357, 7
        %v359 = vsub.s32 0, %v358
        %v360 = vrot.slane %v355, %v359
        %v394 = vunpack.c.l.b16 %v323
        %v395 = vunpack.c.l.b16 %v324
        %v396 = vunpack.c.l.b16 %v325
        %v397 = vunpack.c.l.b16 %v326
        %v398 = vunpack.c.l.b16 %v327
        %v399 = vunpack.c.l.b16 %v328
        %v400 = vunpack.c.l.b16 %v329
        %v401 = vunpack.c.l.b16 %v330
        %v402 = vunpack.c.l.b16 %v331
        %v403 = vunpack.c.l.b16 %v332
        %v404 = vunpack.c.l.b16 %v333
        %v405 = vunpack.c.l.b16 %v334
        %v406 = vunpack.c.l.b16 %v335
        %v407 = vunpack.c.l.b16 %v336
        %v408 = vunpack.c.l.b16 %v337
        %v409 = vunpack.c.l.b16 %v338
        %v410 = vunpack.c.l.b16 %v339
        %v411 = vunpack.c.l.b16 %v340
        %v412 = vunpack.c.l.b16 %v341
        %v413 = vunpack.c.l.b16 %v342
        %v414 = vunpack.c.l.b16 %v343
        %v415 = vunpack.c.l.b16 %v344
        %v416 = vunpack.c.l.b16 %v345
        %v417 = vunpack.c.l.b16 %v346
        %v418 = vunpack.c.l.b16 %v347
        %v419 = vunpack.c.l.b16 %v348
        %v420 = vunpack.c.l.b16 %v349
        %v421 = vunpack.c.l.b16 %v350
        %v422 = vunpack.c.l.b16 %v351
        %v423 = vunpack.c.l.b16 %v352
        %v424 = vunpack.c.l.b16 %v353
        %v425 = vunpack.c.l.b16 %v354
        %v426 = vpack.c.b16 %v395, %v394
        %v427 = vpack.c.b16 %v397, %v396
        %v428 = vpack.c.b16 %v399, %v398
        %v429 = vpack.c.b16 %v401, %v400
        %v430 = vpack.c.b16 %v403, %v402
        %v431 = vpack.c.b16 %v405, %v404
        %v432 = vpack.c.b16 %v407, %v406
        %v433 = vpack.c.b16 %v409, %v408
        %v434 = vpack.c.b16 %v411, %v410
        %v435 = vpack.c.b16 %v413, %v412
        %v436 = vpack.c.b16 %v415, %v414
        %v437 = vpack.c.b16 %v417, %v416
        %v438 = vpack.c.b16 %v419, %v418
        %v439 = vpack.c.b16 %v421, %v420
        %v440 = vpack.c.b16 %v423, %v422
        %v441 = vpack.c.b16 %v425, %v424
        %458 = vmatprep.subr.bf16.mxu0 0
        %459 = vmatpush1.bf16.msra.mxu0 %v426
        %460 = vmatprep.subr.bf16.mxu0 0
        %461 = vmatpush1.bf16.msra.mxu0 %v427
        %462 = vmatprep.subr.bf16.mxu0 0
        %463 = vmatpush1.bf16.msra.mxu0 %v428
        %464 = vmatprep.subr.bf16.mxu0 0
        %465 = vmatpush1.bf16.msra.mxu0 %v429
        %466 = vmatprep.subr.bf16.mxu0 0
        %467 = vmatpush1.bf16.msra.mxu0 %v430
        %468 = vmatprep.subr.bf16.mxu0 0
        %469 = vmatpush1.bf16.msra.mxu0 %v431
        %470 = vmatprep.subr.bf16.mxu0 0
        %471 = vmatpush1.bf16.msra.mxu0 %v432
        %472 = vmatprep.subr.bf16.mxu0 0
        %473 = vmatpush1.bf16.msra.mxu0 %v433
        %474 = vmatprep.subr.bf16.mxu0 0
        %475 = vmatpush1.bf16.msra.mxu0 %v434
        %476 = vmatprep.subr.bf16.mxu0 0
        %477 = vmatpush1.bf16.msra.mxu0 %v435
        %478 = vmatprep.subr.bf16.mxu0 0
        %479 = vmatpush1.bf16.msra.mxu0 %v436
        %480 = vmatprep.subr.bf16.mxu0 0
        %481 = vmatpush1.bf16.msra.mxu0 %v437
        %482 = vmatprep.subr.bf16.mxu0 0
        %483 = vmatpush1.bf16.msra.mxu0 %v438
        %484 = vmatprep.subr.bf16.mxu0 0
        %485 = vmatpush1.bf16.msra.mxu0 %v439
        %486 = vmatprep.subr.bf16.mxu0 0
        %487 = vmatpush1.bf16.msra.mxu0 %v440
        %488 = vmatprep.subr.bf16.mxu0 0
        %489 = vmatpush1.bf16.msra.mxu0 %v441
        %490 = vmatprep.mubr.bf16.mxu0 %v320
        %491 = vmatmul.mubr.bf16.gmra.mrb[0].mxu0 %v319
        %v492 = vpop.f32.mrb[0].mxu0
        %v493 = vadd.f32 %v360, %v492
        %v494 = vpop.f32.mrb[0].mxu0
        %v495 = vpop.f32.mrb[0].mxu0
        %v496 = vadd.f32 %v360, %v495
        %v497 = vpop.f32.mrb[0].mxu0
        %498 = vmatprep.mubr.bf16.mxu0 %v322
        %499 = vmatmul.mubr.bf16.gmra.mrb[0].mxu0 %v321
        %v500 = vpop.f32.mrb[0].mxu0
        %v501 = vadd.f32 %v360, %v500
        %v502 = vpop.f32.mrb[0].mxu0
        %v503 = vpop.f32.mrb[0].mxu0
        %v504 = vadd.f32 %v360, %v503
        %v505 = vpop.f32.mrb[0].mxu0
        %506 = vdwg.mxu0
        %v507 = vpack.c.bf16 %v496, %v493
        %v508 = vpack.c.bf16 %v504, %v501
        %509 = vst [vmem:[#allocation4 + $0x8] sm:$0xff] %v507
        %510 = vst [vmem:[#allocation4 + $0x18] sm:$0xff] %v508
        %p511 = scmp.eq.s32.totalorder %s30, 2
        // Predicated region
        $region49: #{tpu_custom_call.1} parent=31 // pred_check
          %p512 = pneg %p511
        $region50: #{tpu_custom_call.1} parent=31 // pred_check_branch
          %514 = sbr.rel (%p512) target = $region52
        $region51: #{tpu_custom_call.1} parent=31 // pred_region
          %515 = vst [vmem:[#allocation5] sm:$0xff] %v493
          %516 = vst [vmem:[#allocation5 + $0x8] sm:$0xff] %v496
          %517 = vst [vmem:[#allocation5 + $0x10] sm:$0xff] %v501
          %518 = vst [vmem:[#allocation5 + $0x18] sm:$0xff] %v504
          %v519 = vlaneseq
          %v520 = vshrl.u32 %v519, 7
          %v521 = vadd.s32 %v520, 8
          %v522 = vlaneseq
          %v523 = vand.u32 %v522, 127
          %vm524 = vcmp.eq.s32.totalorder %v520, %v523
          %vm525 = vcmp.eq.s32.totalorder %v521, %v523
          %v526 = vsel %vm524, 1, 0
          %v527 = vsel %vm525, 1, 0
          %v528 = vcvt.s32.f32 %v526
          %v529 = vcvt.s32.f32 %v527
          %s530 = sld [smem:[#allocation7]]
          %s531 = sld [smem:[#allocation8]]
          %s532 = scalar_lea.vmem [#allocation5], %s530
          %v533 = vld [vmem:[%s532] sm:$0xff]
          %v534 = vld [vmem:[%s532 + $0x8] sm:$0xff]
          %v535 = vstv %s531
          %vm536 = vcmp.lt.s32.totalorder %v520, %v535
          %vm537 = vcmp.lt.s32.totalorder %v521, %v535
          %v538 = vsel %vm536, %v533, 0.0
          %v539 = vsel %vm537, %v534, 0.0
          %v540 = vlaneseq
          %v541 = vshrl.u32 %v540, 7
          %v542 = vsub.s32 0, %v541
          %v543 = vrot.slane %v533, %v542
          %v544 = vsub.f32 %v538, %v543
          %v545 = vsub.f32 %v539, %v543
          %547 = vset.pattern.permute.xlu0 0
          %548 = vperm.xlu0 %547, %v544
          %v549 = vpop.permute.xlu0 %548
          %552 = vset.pattern.permute.xlu0 0
          %553 = vperm.xlu0 %552, %v545
          %v554 = vpop.permute.xlu0 %553
          %v556 = vmul.f32 %v549, %v528
          %v557 = vmul.f32 %v554, %v529
          %v558 = vadd.f32 %v556, %v557
          %v559 = vrot.slane %v558, 4
          %v560 = vadd.f32 %v558, %v559
          %v561 = vrot.slane %v560, 2
          %v562 = vadd.f32 %v560, %v561
          %v563 = vrot.slane %v562, 1
          %v564 = vadd.f32 %v562, %v563
          %s565 = sld [smem:[#allocation7 + $0x1]]
          %s566 = sld [smem:[#allocation8 + $0x1]]
          %s567 = scalar_lea.vmem [#allocation5], %s565
          %v568 = vld [vmem:[%s567] sm:$0xff]
          %v569 = vld [vmem:[%s567 + $0x8] sm:$0xff]
          %v570 = vstv %s566
          %vm571 = vcmp.lt.s32.totalorder %v520, %v570
          %vm572 = vcmp.lt.s32.totalorder %v521, %v570
          %v573 = vsel %vm571, %v568, 0.0
          %v574 = vsel %vm572, %v569, 0.0
          %v575 = vlaneseq
          %v576 = vshrl.u32 %v575, 7
          %v577 = vsub.s32 0, %v576
          %v578 = vrot.slane %v568, %v577
          %v579 = vsub.f32 %v573, %v578
          %v580 = vsub.f32 %v574, %v578
          %582 = vset.pattern.permute.xlu0 0
          %583 = vperm.xlu0 %582, %v579
          %v584 = vpop.permute.xlu0 %583
          %587 = vset.pattern.permute.xlu0 0
          %588 = vperm.xlu0 %587, %v580
          %v589 = vpop.permute.xlu0 %588
          %v591 = vmul.f32 %v584, %v528
          %v592 = vmul.f32 %v589, %v529
          %v593 = vadd.f32 %v591, %v592
          %v594 = vrot.slane %v593, 4
          %v595 = vadd.f32 %v593, %v594
          %v596 = vrot.slane %v595, 2
          %v597 = vadd.f32 %v595, %v596
          %v598 = vrot.slane %v597, 1
          %v599 = vadd.f32 %v597, %v598
          %vm600 = vcmask 1040384
          %v601 = vsel %vm600, %v564, %v599
          %vm602 = vcmask 1041408
          %v603 = vsel %vm602, %v601, 0.0
          %604 = vst [vmem:[#allocation14] sm:$0xff] %v603
        $region52: #{tpu_custom_call.1} parent=31 // pred_fallthru
          _
        // Predicated region
        $region53: #{tpu_custom_call.1} parent=31 // pred_check
          %p605 = pneg %p116
        $region54: #{tpu_custom_call.1} parent=31 // pred_check_branch
          %607 = sbr.rel (%p605) target = $region56
        $region55: #{tpu_custom_call.1} parent=31 // pred_region
          %s609 = ssub.s32 128, 128
          %610 = vsyncadd [#allocation11], %s609
          %s612 = sshll.u32 [#allocation14], 4
          %s613 = int_to_ptr.vmem [resolvable:$true] %s612
          %615 = dma.vmem_to_hbm [thread:$0]  %s613, 128, %s6, [#allocation11]
        $region56: #{tpu_custom_call.1} parent=31 // pred_fallthru
          _
        // Predicated region
        $region57: #{tpu_custom_call.1} parent=31 // pred_check
          %p616 = pneg %p116
        $region58: #{tpu_custom_call.1} parent=31 // pred_check_branch
          %618 = sbr.rel (%p616) target = $region60
        $region59: #{tpu_custom_call.1} parent=31 // pred_region
          %619 = dma.done [#allocation11], 128
        $region60: #{tpu_custom_call.1} parent=31 // pred_fallthru
          _
      $region32: #{tpu_custom_call.1} parent=5 // pred_fallthru
        _
      %p620 = scmp.le.s32.totalorder 2, %s25
      // Predicated region
      $region61: #{tpu_custom_call.1} parent=5 // pred_check
        %p621 = pneg %p620
      $region62: #{tpu_custom_call.1} parent=5 // pred_check_branch
        %623 = sbr.rel (%p621) target = $region64
      $region63: #{tpu_custom_call.1} parent=5 // pred_region
        %s624 = ssub.s32 %s25, 2
      $region64: #{tpu_custom_call.1} parent=5 // pred_fallthru
        _
    $region6: #{tpu_custom_call.1} parent=1 // loop_footer
      %s29 = sadd.s32 1, %s25
    $region7: #{tpu_custom_call.1} parent=1 // loop_footer_branch
      %24 = sbr.rel target = $region3
    $region8: #{tpu_custom_call.1} parent=1 // loop_exit
      _
    %625 = vsyncpa [#allocation10], 1
    %s626 = scalar_lea.sflag [#allocation10], 1
    %627 = vsyncpa %s626, 1
    %628 = vsyncpa [#allocation13], 1
    %s629 = scalar_lea.sflag [#allocation13], 1
    %630 = vsyncpa %s629, 1
    %631 = vsyncpa [#allocation11], 1
    %s632 = scalar_lea.sflag [#allocation11], 1
    %633 = vsyncpa %s632, 1
  %634 = vsyncmov [#allocation3]
  %s635 = vpop.sfrf %634
  %p636 = scmp.eq.s32.totalorder %s635, 0
  %p637 = pneg %p636
  %639 = shalt.err (%p637)

</llo_original>
